<compile_context>
chip_gen: v7x
topology: tpu7x:2x2x1
jax: 0.10.0
libtpu: 0.0.40
codegen_flags: <defaults>
</compile_context>

<pallas_src>
import functools

import jax
import jax.numpy as jnp
from jax import lax
from jax.experimental import pallas as pl
from jax.experimental.pallas import tpu as pltpu


def _lowest(dtype):
    """Smallest representable value (used to mask out-of-group neighbours)."""
    if jnp.issubdtype(dtype, jnp.floating):
        return float("-inf")
    return int(jnp.iinfo(dtype).min)


def _eq_group_max(x, c, k):
    """Boolean mask: x == max over its class group.

    x: (rows, L).  If k == 1 the group is the whole last axis (plain layout).
    Otherwise L == k*c and lanes [g*c, (g+1)*c) hold one original row's C
    class scores; the group max is computed with log2(c) doubling steps of
    "max with both +s and -s lane neighbours", where neighbours that would
    fall outside the group are replaced by the dtype minimum.  Using both
    directions with symmetric masks makes the result independent of the
    rotate sign convention of pltpu.roll.
    """
    if k == 1:
        return x == jnp.max(x, axis=-1, keepdims=True)
    if c == 1:
        return jnp.ones(x.shape, dtype=jnp.bool_)

    length = x.shape[-1]                       # = 128 (k * c)
    lane = lax.broadcasted_iota(jnp.int32, (1, length), 1)
    lane_in_group = lane % c                   # class index within the group
    fill = _lowest(x.dtype)

    g = x
    s = 1
    while s < c:                               # c divides 128 => power of two
        a = pltpu.roll(g, shift=length - s, axis=1)   # lane +s (or -s) neighbour
        b = pltpu.roll(g, shift=s, axis=1)            # lane -s (or +s) neighbour
        a_ok = lane_in_group < (c - s)         # +s neighbour stays in group
        b_ok = lane_in_group >= s              # -s neighbour stays in group
        g = jnp.maximum(
            g,
            jnp.maximum(jnp.where(a_ok, a, fill), jnp.where(b_ok, b, fill)),
        )
        s *= 2
    return x == g


def _f1_counts_kernel(pred_ref, label_ref, tp_ref, pc_ref, lc_ref,
                      *, c, k, rows_total):
    """Accumulate per-class tp / predicted / label counts over the row axis."""
    n = pl.program_id(1)

    @pl.when(n == 0)
    def _init():
        tp_ref[...] = jnp.zeros_like(tp_ref)
        pc_ref[...] = jnp.zeros_like(pc_ref)
        lc_ref[...] = jnp.zeros_like(lc_ref)

    pred = pred_ref[0]       # (tn, L), native dtype
    label = label_ref[0]     # (tn, L), native dtype
    tn = pred.shape[0]

    pred_eq = _eq_group_max(pred, c, k)
    label_eq = _eq_group_max(label, c, k)

    # Ragged-tail handling: mask rows beyond rows_total in the last (partial)
    # block.  Static no-op when the row tile divides the row count.
    if rows_total % tn != 0:
        row = lax.broadcasted_iota(jnp.int32, (tn, 1), 0) + n * tn
        valid = row < rows_total
        pred_eq = jnp.logical_and(pred_eq, valid)
        label_eq = jnp.logical_and(label_eq, valid)

    tp_mask = jnp.logical_and(pred_eq, label_eq)   # boolean fusion (no f32 mul)

    tp_ref[0] += jnp.sum(tp_mask.astype(jnp.float32), axis=0, keepdims=True)
    pc_ref[0] += jnp.sum(pred_eq.astype(jnp.float32), axis=0, keepdims=True)
    lc_ref[0] += jnp.sum(label_eq.astype(jnp.float32), axis=0, keepdims=True)


@functools.partial(jax.jit, static_argnames=("row_tile_cap",))
def f1_metric(prediction, label, row_tile_cap=None):
    assert prediction.shape == label.shape, "prediction/label shapes must match"
    B, N, C = prediction.shape

    # ---- lane packing: fold k = 128 // C rows into one 128-wide lane row ----
    k = 1
    if 0 < C <= 128 and 128 % C == 0:
        kk = 128 // C
        if N % kk == 0:
            k = kk
    L = k * C
    rows = N // k
    pred = prediction.reshape(B, rows, L)   # free view: (b, r*k+j, c) -> (b, r, j*C + c)
    lab = label.reshape(B, rows, L)

    # ---- keep both v7x TensorCores busy when B is odd (incl. B == 1) --------
    split = 1
    if B % 2 == 1 and rows % 2 == 0 and rows >= 2:
        split = 2
        pred = pred.reshape(B * split, rows // split, L)   # still a free view
        lab = lab.reshape(B * split, rows // split, L)
    bs = B * split
    rows_s = rows // split

    # ---- row-tile size from a VMEM budget (2 inputs x 2 pipeline buffers) ---
    itemsize = max(prediction.dtype.itemsize, label.dtype.itemsize)
    lane_pad = -(-L // 128) * 128
    budget = 16 * 1024 * 1024
    max_rows = max(8, budget // (4 * lane_pad * itemsize))
    if row_tile_cap is not None:
        max_rows = max(8, min(max_rows, int(row_tile_cap)))
    if rows_s <= max_rows:
        tn = rows_s                       # single step: full row extent allowed
    else:
        tn = (max_rows // 8) * 8          # multiple of 8; tail masked in-kernel
    grid = (bs, pl.cdiv(rows_s, tn))

    kernel = functools.partial(_f1_counts_kernel, c=C, k=k, rows_total=rows_s)

    count_shape = jax.ShapeDtypeStruct((bs, 1, L), jnp.float32)
    count_spec = pl.BlockSpec((1, 1, L), lambda b, n: (b, 0, 0))
    in_spec = pl.BlockSpec((1, tn, L), lambda b, n: (b, n, 0))

    cost = pl.CostEstimate(
        flops=20 * B * N * C,
        transcendentals=0,
        bytes_accessed=(pred.size + lab.size) * itemsize + 3 * bs * L * 4,
    )

    tp, pc, lc = pl.pallas_call(
        kernel,
        out_shape=(count_shape, count_shape, count_shape),
        grid_spec=pltpu.PrefetchScalarGridSpec(
            num_scalar_prefetch=0,
            grid=grid,
            in_specs=[in_spec, in_spec],
            out_specs=[count_spec, count_spec, count_spec],
        ),
        compiler_params=pltpu.CompilerParams(
            dimension_semantics=("parallel", "arbitrary"),
            vmem_limit_bytes=32 * 1024 * 1024,
        ),
        cost_estimate=cost,
    )(pred, lab)

    # ---- tiny wrapper-side finalize: collapse split/k-groups, divide, mean --
    def _collapse(x):                          # (bs, 1, L) -> (B, C)
        return x.reshape(B, split, k, C).sum(axis=(1, 2))

    tp = _collapse(tp)
    pc = _collapse(pc)
    lc = _collapse(lc)
    eps = jnp.float32(1e-8)
    fp = pc - tp
    fn = lc - tp
    precision = tp / (tp + fp + eps)
    recall = tp / (tp + fn + eps)
    f1 = 2.0 * (precision * recall) / (precision + recall + eps)
    return jnp.mean(f1)


def f1_reference(prediction, label):
    """Pure-JAX reference mirroring the PyTorch module (classes=None)."""
    pred_oh = (prediction == jnp.max(prediction, axis=-1, keepdims=True)).astype(jnp.float32)
    label_oh = (label == jnp.max(label, axis=-1, keepdims=True)).astype(jnp.float32)
    tp = jnp.sum(label_oh * pred_oh, axis=1)
    fp = jnp.sum((1.0 - label_oh) * pred_oh, axis=1)
    fn = jnp.sum(label_oh * (1.0 - pred_oh), axis=1)
    p = tp / (tp + fp + 1e-8)
    r = tp / (tp + fn + 1e-8)
    f1 = 2.0 * (p * r) / (p + r + 1e-8)
    return jnp.mean(f1)


if __name__ == "__main__":
    key = jax.random.PRNGKey(0)
    k1, k2, k3, k4, k5, k6 = jax.random.split(key, 6)

    # Small shape consistent with the module's (..., seq, classes) contract.
    B, N, C = 2, 16, 8
    prediction = jax.random.normal(k1, (B, N, C), dtype=jnp.float32)
    label = jax.random.normal(k2, (B, N, C), dtype=jnp.float32)
    out = jax.block_until_ready(f1_metric(prediction, label))
    ref = f1_reference(prediction, label)
    assert jnp.allclose(out, ref, atol=1e-5, rtol=1e-5), (out, ref)

    # Larger N: lane-packed path; also rerun with a small forced row tile so
    # the multi-step accumulating grid and the ragged-tail mask are exercised.
    B2, N2, C2 = 2, 4096, 8
    p2 = jax.random.normal(k3, (B2, N2, C2), dtype=jnp.float32)
    l2 = jax.random.normal(k4, (B2, N2, C2), dtype=jnp.float32)
    out2 = jax.block_until_ready(f1_metric(p2, l2))
    ref2 = f1_reference(p2, l2)
    assert jnp.allclose(out2, ref2, atol=1e-5, rtol=1e-5), (out2, ref2)
    out2t = jax.block_until_ready(f1_metric(p2, l2, row_tile_cap=48))
    assert jnp.allclose(out2t, ref2, atol=1e-5, rtol=1e-5), (out2t, ref2)

    # Odd batch (two-core split path) + C=7 (cannot be lane-packed) -> plain
    # layout fallback, multi-step grid with a ragged tail.
    B3, N3, C3 = 3, 64, 7
    p3 = jax.random.normal(k5, (B3, N3, C3), dtype=jnp.float32)
    l3 = jax.random.normal(k6, (B3, N3, C3), dtype=jnp.float32)
    out3 = jax.block_until_ready(f1_metric(p3, l3, row_tile_cap=24))
    ref3 = f1_reference(p3, l3)
    assert jnp.allclose(out3, ref3, atol=1e-5, rtol=1e-5), (out3, ref3)

    print("KERNEL_OK")
</pallas_src>

<mosaic_0001>
module attributes {stable_mosaic.version = 11 : i64} {
  func.func @_f1_counts_kernel(%arg0: i32, %arg1: i32, %arg2: memref<1x1x128xf32, #tpu.memory_space<vmem>>, %arg3: memref<1x1x128xf32, #tpu.memory_space<vmem>>, %arg4: memref<1x1x128xf32, #tpu.memory_space<vmem>>, %arg5: memref<1x1x128xf32, #tpu.memory_space<vmem>>, %arg6: memref<1x1x128xf32, #tpu.memory_space<vmem>>) attributes {dimension_semantics = [#tpu.dimension_semantics<parallel>, #tpu.dimension_semantics<arbitrary>], iteration_bounds = array<i64: 2, 1>, scalar_prefetch = 0 : i64, scratch_operands = 0 : i64, tpu.core_type = #tpu.core_type<tc>, window_params = [{transform_indices = @transform_0, window_bounds = array<i64: 1, 1, 128>}, {transform_indices = @transform_1, window_bounds = array<i64: 1, 1, 128>}, {transform_indices = @transform_2, window_bounds = array<i64: 1, 1, 128>}, {transform_indices = @transform_3, window_bounds = array<i64: 1, 1, 128>}, {transform_indices = @transform_4, window_bounds = array<i64: 1, 1, 128>}]} {
    %c0_i32 = arith.constant 0 : i32
    %0 = arith.cmpi eq, %arg1, %c0_i32 : i32
    %1 = arith.extui %0 : i1 to i32
    %c0_i32_0 = arith.constant 0 : i32
    %2 = arith.cmpi ne, %1, %c0_i32_0 : i32
    scf.if %2 {
      %cst_65 = arith.constant 0.000000e+00 : f32
      %146 = vector.broadcast %cst_65 : f32 to vector<1x1x128xf32>
      %c0_66 = arith.constant 0 : index
      %c0_67 = arith.constant 0 : index
      %c0_68 = arith.constant 0 : index
      %147 = vector.load %arg4[%c0_66, %c0_67, %c0_68] : memref<1x1x128xf32, #tpu.memory_space<vmem>>, vector<1x1x128xf32>
      tpu.vector_store %arg4[%c0_66, %c0_67, %c0_68], %146 {strides = array<i32>} : memref<1x1x128xf32, #tpu.memory_space<vmem>>, vector<1x1x128xf32>,
      %cst_69 = arith.constant 0.000000e+00 : f32
      %148 = vector.broadcast %cst_69 : f32 to vector<1x1x128xf32>
      %c0_70 = arith.constant 0 : index
      %c0_71 = arith.constant 0 : index
      %c0_72 = arith.constant 0 : index
      %149 = vector.load %arg5[%c0_70, %c0_71, %c0_72] : memref<1x1x128xf32, #tpu.memory_space<vmem>>, vector<1x1x128xf32>
      tpu.vector_store %arg5[%c0_70, %c0_71, %c0_72], %148 {strides = array<i32>} : memref<1x1x128xf32, #tpu.memory_space<vmem>>, vector<1x1x128xf32>,
      %cst_73 = arith.constant 0.000000e+00 : f32
      %150 = vector.broadcast %cst_73 : f32 to vector<1x1x128xf32>
      %c0_74 = arith.constant 0 : index
      %c0_75 = arith.constant 0 : index
      %c0_76 = arith.constant 0 : index
      %151 = vector.load %arg6[%c0_74, %c0_75, %c0_76] : memref<1x1x128xf32, #tpu.memory_space<vmem>>, vector<1x1x128xf32>
      tpu.vector_store %arg6[%c0_74, %c0_75, %c0_76], %150 {strides = array<i32>} : memref<1x1x128xf32, #tpu.memory_space<vmem>>, vector<1x1x128xf32>,
    } else {
    }
    %c0 = arith.constant 0 : index
    %c0_1 = arith.constant 0 : index
    %c0_2 = arith.constant 0 : index
    %3 = vector.load %arg2[%c0, %c0_1, %c0_2] : memref<1x1x128xf32, #tpu.memory_space<vmem>>, vector<1x1x128xf32>
    %4 = vector.shape_cast %3 : vector<1x1x128xf32> to vector<1x128xf32>
    %c0_3 = arith.constant 0 : index
    %c0_4 = arith.constant 0 : index
    %c0_5 = arith.constant 0 : index
    %5 = vector.load %arg3[%c0_3, %c0_4, %c0_5] : memref<1x1x128xf32, #tpu.memory_space<vmem>>, vector<1x1x128xf32>
    %6 = vector.shape_cast %5 : vector<1x1x128xf32> to vector<1x128xf32>
    %7 = tpu.iota {dimensions = array<i32: 1>} : vector<1x128xi32>
    %c8_i32 = arith.constant 8 : i32
    %c0_i32_6 = arith.constant 0 : i32
    %8 = arith.cmpi eq, %c8_i32, %c0_i32_6 : i32
    %c1_i32 = arith.constant 1 : i32
    %9 = arith.select %8, %c1_i32, %c8_i32 : i32
    %10 = vector.broadcast %9 : i32 to vector<1x128xi32>
    %11 = arith.remsi %7, %10 : vector<1x128xi32>
    %c0_i32_7 = arith.constant 0 : i32
    %12 = vector.broadcast %c0_i32_7 : i32 to vector<1x128xi32>
    %13 = arith.cmpi ne, %11, %12 : vector<1x128xi32>
    %c0_i32_8 = arith.constant 0 : i32
    %14 = vector.broadcast %c0_i32_8 : i32 to vector<1x128xi32>
    %15 = arith.cmpi slt, %11, %14 : vector<1x128xi32>
    %c0_i32_9 = arith.constant 0 : i32
    %16 = arith.cmpi slt, %9, %c0_i32_9 : i32
    %17 = vector.broadcast %16 : i1 to vector<1x128xi1>
    %18 = vector.broadcast %17 : vector<1x128xi1> to vector<1x128xi1>
    %19 = arith.xori %15, %18 : vector<1x128xi1>
    %20 = arith.andi %19, %13 : vector<1x128xi1>
    %21 = vector.broadcast %9 : i32 to vector<1x128xi32>
    %22 = arith.addi %11, %21 : vector<1x128xi32>
    %23 = arith.select %20, %22, %11 : vector<1x128xi1>, vector<1x128xi32>
    %c127_i32 = arith.constant 127 : i32
    %24 = tpu.dynamic_rotate %4 by %c127_i32 dim 1 : vector<1x128xf32>, i32 -> vector<1x128xf32>
    %c1_i32_10 = arith.constant 1 : i32
    %25 = tpu.dynamic_rotate %4 by %c1_i32_10 dim 1 : vector<1x128xf32>, i32 -> vector<1x128xf32>
    %c7_i32 = arith.constant 7 : i32
    %26 = vector.broadcast %c7_i32 : i32 to vector<1x128xi32>
    %27 = arith.cmpi slt, %23, %26 : vector<1x128xi32>
    %c1_i32_11 = arith.constant 1 : i32
    %28 = vector.broadcast %c1_i32_11 : i32 to vector<1x128xi32>
    %29 = arith.cmpi sge, %23, %28 : vector<1x128xi32>
    %cst = arith.constant 0xFF800000 : f32
    %30 = vector.broadcast %cst : f32 to vector<1x128xf32>
    %31 = arith.select %27, %24, %30 : vector<1x128xi1>, vector<1x128xf32>
    %cst_12 = arith.constant 0xFF800000 : f32
    %32 = vector.broadcast %cst_12 : f32 to vector<1x128xf32>
    %33 = arith.select %29, %25, %32 : vector<1x128xi1>, vector<1x128xf32>
    %34 = arith.maximumf %31, %33 : vector<1x128xf32>
    %35 = arith.maximumf %4, %34 : vector<1x128xf32>
    %c126_i32 = arith.constant 126 : i32
    %36 = tpu.dynamic_rotate %35 by %c126_i32 dim 1 : vector<1x128xf32>, i32 -> vector<1x128xf32>
    %c2_i32 = arith.constant 2 : i32
    %37 = tpu.dynamic_rotate %35 by %c2_i32 dim 1 : vector<1x128xf32>, i32 -> vector<1x128xf32>
    %c6_i32 = arith.constant 6 : i32
    %38 = vector.broadcast %c6_i32 : i32 to vector<1x128xi32>
    %39 = arith.cmpi slt, %23, %38 : vector<1x128xi32>
    %c2_i32_13 = arith.constant 2 : i32
    %40 = vector.broadcast %c2_i32_13 : i32 to vector<1x128xi32>
    %41 = arith.cmpi sge, %23, %40 : vector<1x128xi32>
    %cst_14 = arith.constant 0xFF800000 : f32
    %42 = vector.broadcast %cst_14 : f32 to vector<1x128xf32>
    %43 = arith.select %39, %36, %42 : vector<1x128xi1>, vector<1x128xf32>
    %cst_15 = arith.constant 0xFF800000 : f32
    %44 = vector.broadcast %cst_15 : f32 to vector<1x128xf32>
    %45 = arith.select %41, %37, %44 : vector<1x128xi1>, vector<1x128xf32>
    %46 = arith.maximumf %43, %45 : vector<1x128xf32>
    %47 = arith.maximumf %35, %46 : vector<1x128xf32>
    %c124_i32 = arith.constant 124 : i32
    %48 = tpu.dynamic_rotate %47 by %c124_i32 dim 1 : vector<1x128xf32>, i32 -> vector<1x128xf32>
    %c4_i32 = arith.constant 4 : i32
    %49 = tpu.dynamic_rotate %47 by %c4_i32 dim 1 : vector<1x128xf32>, i32 -> vector<1x128xf32>
    %c4_i32_16 = arith.constant 4 : i32
    %50 = vector.broadcast %c4_i32_16 : i32 to vector<1x128xi32>
    %51 = arith.cmpi slt, %23, %50 : vector<1x128xi32>
    %c4_i32_17 = arith.constant 4 : i32
    %52 = vector.broadcast %c4_i32_17 : i32 to vector<1x128xi32>
    %53 = arith.cmpi sge, %23, %52 : vector<1x128xi32>
    %cst_18 = arith.constant 0xFF800000 : f32
    %54 = vector.broadcast %cst_18 : f32 to vector<1x128xf32>
    %55 = arith.select %51, %48, %54 : vector<1x128xi1>, vector<1x128xf32>
    %cst_19 = arith.constant 0xFF800000 : f32
    %56 = vector.broadcast %cst_19 : f32 to vector<1x128xf32>
    %57 = arith.select %53, %49, %56 : vector<1x128xi1>, vector<1x128xf32>
    %58 = arith.maximumf %55, %57 : vector<1x128xf32>
    %59 = arith.maximumf %47, %58 : vector<1x128xf32>
    %60 = arith.cmpf oeq, %4, %59 : vector<1x128xf32>
    %61 = tpu.iota {dimensions = array<i32: 1>} : vector<1x128xi32>
    %c8_i32_20 = arith.constant 8 : i32
    %c0_i32_21 = arith.constant 0 : i32
    %62 = arith.cmpi eq, %c8_i32_20, %c0_i32_21 : i32
    %c1_i32_22 = arith.constant 1 : i32
    %63 = arith.select %62, %c1_i32_22, %c8_i32_20 : i32
    %64 = vector.broadcast %63 : i32 to vector<1x128xi32>
    %65 = arith.remsi %61, %64 : vector<1x128xi32>
    %c0_i32_23 = arith.constant 0 : i32
    %66 = vector.broadcast %c0_i32_23 : i32 to vector<1x128xi32>
    %67 = arith.cmpi ne, %65, %66 : vector<1x128xi32>
    %c0_i32_24 = arith.constant 0 : i32
    %68 = vector.broadcast %c0_i32_24 : i32 to vector<1x128xi32>
    %69 = arith.cmpi slt, %65, %68 : vector<1x128xi32>
    %c0_i32_25 = arith.constant 0 : i32
    %70 = arith.cmpi slt, %63, %c0_i32_25 : i32
    %71 = vector.broadcast %70 : i1 to vector<1x128xi1>
    %72 = vector.broadcast %71 : vector<1x128xi1> to vector<1x128xi1>
    %73 = arith.xori %69, %72 : vector<1x128xi1>
    %74 = arith.andi %73, %67 : vector<1x128xi1>
    %75 = vector.broadcast %63 : i32 to vector<1x128xi32>
    %76 = arith.addi %65, %75 : vector<1x128xi32>
    %77 = arith.select %74, %76, %65 : vector<1x128xi1>, vector<1x128xi32>
    %c127_i32_26 = arith.constant 127 : i32
    %78 = tpu.dynamic_rotate %6 by %c127_i32_26 dim 1 : vector<1x128xf32>, i32 -> vector<1x128xf32>
    %c1_i32_27 = arith.constant 1 : i32
    %79 = tpu.dynamic_rotate %6 by %c1_i32_27 dim 1 : vector<1x128xf32>, i32 -> vector<1x128xf32>
    %c7_i32_28 = arith.constant 7 : i32
    %80 = vector.broadcast %c7_i32_28 : i32 to vector<1x128xi32>
    %81 = arith.cmpi slt, %77, %80 : vector<1x128xi32>
    %c1_i32_29 = arith.constant 1 : i32
    %82 = vector.broadcast %c1_i32_29 : i32 to vector<1x128xi32>
    %83 = arith.cmpi sge, %77, %82 : vector<1x128xi32>
    %cst_30 = arith.constant 0xFF800000 : f32
    %84 = vector.broadcast %cst_30 : f32 to vector<1x128xf32>
    %85 = arith.select %81, %78, %84 : vector<1x128xi1>, vector<1x128xf32>
    %cst_31 = arith.constant 0xFF800000 : f32
    %86 = vector.broadcast %cst_31 : f32 to vector<1x128xf32>
    %87 = arith.select %83, %79, %86 : vector<1x128xi1>, vector<1x128xf32>
    %88 = arith.maximumf %85, %87 : vector<1x128xf32>
    %89 = arith.maximumf %6, %88 : vector<1x128xf32>
    %c126_i32_32 = arith.constant 126 : i32
    %90 = tpu.dynamic_rotate %89 by %c126_i32_32 dim 1 : vector<1x128xf32>, i32 -> vector<1x128xf32>
    %c2_i32_33 = arith.constant 2 : i32
    %91 = tpu.dynamic_rotate %89 by %c2_i32_33 dim 1 : vector<1x128xf32>, i32 -> vector<1x128xf32>
    %c6_i32_34 = arith.constant 6 : i32
    %92 = vector.broadcast %c6_i32_34 : i32 to vector<1x128xi32>
    %93 = arith.cmpi slt, %77, %92 : vector<1x128xi32>
    %c2_i32_35 = arith.constant 2 : i32
    %94 = vector.broadcast %c2_i32_35 : i32 to vector<1x128xi32>
    %95 = arith.cmpi sge, %77, %94 : vector<1x128xi32>
    %cst_36 = arith.constant 0xFF800000 : f32
    %96 = vector.broadcast %cst_36 : f32 to vector<1x128xf32>
    %97 = arith.select %93, %90, %96 : vector<1x128xi1>, vector<1x128xf32>
    %cst_37 = arith.constant 0xFF800000 : f32
    %98 = vector.broadcast %cst_37 : f32 to vector<1x128xf32>
    %99 = arith.select %95, %91, %98 : vector<1x128xi1>, vector<1x128xf32>
    %100 = arith.maximumf %97, %99 : vector<1x128xf32>
    %101 = arith.maximumf %89, %100 : vector<1x128xf32>
    %c124_i32_38 = arith.constant 124 : i32
    %102 = tpu.dynamic_rotate %101 by %c124_i32_38 dim 1 : vector<1x128xf32>, i32 -> vector<1x128xf32>
    %c4_i32_39 = arith.constant 4 : i32
    %103 = tpu.dynamic_rotate %101 by %c4_i32_39 dim 1 : vector<1x128xf32>, i32 -> vector<1x128xf32>
    %c4_i32_40 = arith.constant 4 : i32
    %104 = vector.broadcast %c4_i32_40 : i32 to vector<1x128xi32>
    %105 = arith.cmpi slt, %77, %104 : vector<1x128xi32>
    %c4_i32_41 = arith.constant 4 : i32
    %106 = vector.broadcast %c4_i32_41 : i32 to vector<1x128xi32>
    %107 = arith.cmpi sge, %77, %106 : vector<1x128xi32>
    %cst_42 = arith.constant 0xFF800000 : f32
    %108 = vector.broadcast %cst_42 : f32 to vector<1x128xf32>
    %109 = arith.select %105, %102, %108 : vector<1x128xi1>, vector<1x128xf32>
    %cst_43 = arith.constant 0xFF800000 : f32
    %110 = vector.broadcast %cst_43 : f32 to vector<1x128xf32>
    %111 = arith.select %107, %103, %110 : vector<1x128xi1>, vector<1x128xf32>
    %112 = arith.maximumf %109, %111 : vector<1x128xf32>
    %113 = arith.maximumf %101, %112 : vector<1x128xf32>
    %114 = arith.cmpf oeq, %6, %113 : vector<1x128xf32>
    %115 = arith.andi %60, %114 : vector<1x128xi1>
    %c0_44 = arith.constant 0 : index
    %c0_45 = arith.constant 0 : index
    %c0_46 = arith.constant 0 : index
    %116 = vector.load %arg4[%c0_44, %c0_45, %c0_46] : memref<1x1x128xf32, #tpu.memory_space<vmem>>, vector<1x1x128xf32>
    %117 = vector.shape_cast %116 : vector<1x1x128xf32> to vector<1x128xf32>
    %118 = arith.extui %115 : vector<1x128xi1> to vector<1x128xi32>
    %119 = arith.sitofp %118 : vector<1x128xi32> to vector<1x128xf32>
    %cst_47 = arith.constant dense<0.000000e+00> : vector<128xf32>
    %120 = vector.multi_reduction <add>, %119, %cst_47 [0] : vector<1x128xf32> to vector<128xf32>
    %121 = vector.shape_cast %120 : vector<128xf32> to vector<1x128xf32>
    %122 = arith.addf %117, %121 : vector<1x128xf32>
    %c0_48 = arith.constant 0 : index
    %c0_49 = arith.constant 0 : index
    %c0_50 = arith.constant 0 : index
    %123 = vector.load %arg4[%c0_48, %c0_49, %c0_50] : memref<1x1x128xf32, #tpu.memory_space<vmem>>, vector<1x1x128xf32>
    %124 = vector.shape_cast %123 : vector<1x1x128xf32> to vector<1x128xf32>
    %125 = vector.shape_cast %122 : vector<1x128xf32> to vector<1x1x128xf32>
    tpu.vector_store %arg4[%c0_48, %c0_49, %c0_50], %125 {strides = array<i32>} : memref<1x1x128xf32, #tpu.memory_space<vmem>>, vector<1x1x128xf32>,
    %c0_51 = arith.constant 0 : index
    %c0_52 = arith.constant 0 : index
    %c0_53 = arith.constant 0 : index
    %126 = vector.load %arg5[%c0_51, %c0_52, %c0_53] : memref<1x1x128xf32, #tpu.memory_space<vmem>>, vector<1x1x128xf32>
    %127 = vector.shape_cast %126 : vector<1x1x128xf32> to vector<1x128xf32>
    %128 = arith.extui %60 : vector<1x128xi1> to vector<1x128xi32>
    %129 = arith.sitofp %128 : vector<1x128xi32> to vector<1x128xf32>
    %cst_54 = arith.constant dense<0.000000e+00> : vector<128xf32>
    %130 = vector.multi_reduction <add>, %129, %cst_54 [0] : vector<1x128xf32> to vector<128xf32>
    %131 = vector.shape_cast %130 : vector<128xf32> to vector<1x128xf32>
    %132 = arith.addf %127, %131 : vector<1x128xf32>
    %c0_55 = arith.constant 0 : index
    %c0_56 = arith.constant 0 : index
    %c0_57 = arith.constant 0 : index
    %133 = vector.load %arg5[%c0_55, %c0_56, %c0_57] : memref<1x1x128xf32, #tpu.memory_space<vmem>>, vector<1x1x128xf32>
    %134 = vector.shape_cast %133 : vector<1x1x128xf32> to vector<1x128xf32>
    %135 = vector.shape_cast %132 : vector<1x128xf32> to vector<1x1x128xf32>
    tpu.vector_store %arg5[%c0_55, %c0_56, %c0_57], %135 {strides = array<i32>} : memref<1x1x128xf32, #tpu.memory_space<vmem>>, vector<1x1x128xf32>,
    %c0_58 = arith.constant 0 : index
    %c0_59 = arith.constant 0 : index
    %c0_60 = arith.constant 0 : index
    %136 = vector.load %arg6[%c0_58, %c0_59, %c0_60] : memref<1x1x128xf32, #tpu.memory_space<vmem>>, vector<1x1x128xf32>
    %137 = vector.shape_cast %136 : vector<1x1x128xf32> to vector<1x128xf32>
    %138 = arith.extui %114 : vector<1x128xi1> to vector<1x128xi32>
    %139 = arith.sitofp %138 : vector<1x128xi32> to vector<1x128xf32>
    %cst_61 = arith.constant dense<0.000000e+00> : vector<128xf32>
    %140 = vector.multi_reduction <add>, %139, %cst_61 [0] : vector<1x128xf32> to vector<128xf32>
    %141 = vector.shape_cast %140 : vector<128xf32> to vector<1x128xf32>
    %142 = arith.addf %137, %141 : vector<1x128xf32>
    %c0_62 = arith.constant 0 : index
    %c0_63 = arith.constant 0 : index
    %c0_64 = arith.constant 0 : index
    %143 = vector.load %arg6[%c0_62, %c0_63, %c0_64] : memref<1x1x128xf32, #tpu.memory_space<vmem>>, vector<1x1x128xf32>
    %144 = vector.shape_cast %143 : vector<1x1x128xf32> to vector<1x128xf32>
    %145 = vector.shape_cast %142 : vector<1x128xf32> to vector<1x1x128xf32>
    tpu.vector_store %arg6[%c0_62, %c0_63, %c0_64], %145 {strides = array<i32>} : memref<1x1x128xf32, #tpu.memory_space<vmem>>, vector<1x1x128xf32>,
    return
  }
  func.func @transform_0(%arg0: i32, %arg1: i32) -> (i32, i32, i32) {
    %c0_i32 = arith.constant 0 : i32
    %c0_i32_0 = arith.constant 0 : i32
    return %arg0, %arg1, %c0_i32 : i32, i32, i32
  }
  func.func @transform_1(%arg0: i32, %arg1: i32) -> (i32, i32, i32) {
    %c0_i32 = arith.constant 0 : i32
    %c0_i32_0 = arith.constant 0 : i32
    return %arg0, %arg1, %c0_i32 : i32, i32, i32
  }
  func.func @transform_2(%arg0: i32, %arg1: i32) -> (i32, i32, i32) {
    %c0_i32 = arith.constant 0 : i32
    %c0_i32_0 = arith.constant 0 : i32
    %c0_i32_1 = arith.constant 0 : i32
    return %arg0, %c0_i32, %c0_i32_0 : i32, i32, i32
  }
  func.func @transform_3(%arg0: i32, %arg1: i32) -> (i32, i32, i32) {
    %c0_i32 = arith.constant 0 : i32
    %c0_i32_0 = arith.constant 0 : i32
    %c0_i32_1 = arith.constant 0 : i32
    return %arg0, %c0_i32, %c0_i32_0 : i32, i32, i32
  }
  func.func @transform_4(%arg0: i32, %arg1: i32) -> (i32, i32, i32) {
    %c0_i32 = arith.constant 0 : i32
    %c0_i32_0 = arith.constant 0 : i32
    %c0_i32_1 = arith.constant 0 : i32
    return %arg0, %c0_i32, %c0_i32_0 : i32, i32, i32
  }
}

</mosaic_0001>

<llo_original>
// kernel: f1_metric.1
$region0: #{f1_metric.1}
  #allocation0 [shape = 'u32[]', space=smem, size = 0x4, offset = 0x4, fixed_abs, tag = 'smem constant byte address 0x4 - core index']
  #allocation1 [shape = 'u32[144,128]{1,0:T(1,128)}', space=vmem, size = 0x12000, scoped, tag = 'internal scratch']
  %s0 = inlined_call_operand.vmem [shape: f32[2,1,128], index: 0, kind: input, shape index: {}]
  %s1 = inlined_call_operand.vmem [shape: f32[2,1,128], index: 1, kind: input, shape index: {}]
  %s2 = inlined_call_operand.vmem [shape: f32[2,1,128], index: 2, kind: output, shape index: {0}]
  %s3 = inlined_call_operand.vmem [shape: f32[2,1,128], index: 3, kind: output, shape index: {1}]
  %s4 = inlined_call_operand.vmem [shape: f32[2,1,128], index: 4, kind: output, shape index: {2}]
  %5 = xla_tuple %s2, %s3, %s4
  %s6 = sld [smem:[#allocation0]]
  $region61: #{f1_metric.1} parent=0
    _
  %s8 = ssub.s32 1, %s6
  %s9 = scalar_select 0, %s8, %s6
  loop: start=0, step=1, limit=4
  $region2: #{f1_metric.1} parent=0 // loop_pre_header
    _
  $region3: #{f1_metric.1} parent=0 // loop_header
    %s11 = sphi 0, %s15
    %p12 = scmp.ge.s32.totalorder %s11, 4
    %s18 = sphi 0, %s30
    %s19 = sphi 0, %s26
    %s20 = sphi 0, %s18
    %s21 = sphi 0, %s19
    %s22 = sphi 0, %s20
    %s23 = sphi 0, %s21
    %s35 = sphi 0, %s37
    %s38 = sphi 0, %s35
    %s39 = sphi 0, %s38
    %s55 = sphi 0, %s39
    %s63 = sphi 0, %s65
    %s66 = sphi 0, %s63
    %s67 = sphi 0, %s66
    %s83 = sphi 0, %s67
    %s89 = sphi 0, %s91
    %s92 = sphi 0, %s89
    %s93 = sphi 0, %s92
    %s109 = sphi 0, %s93
    %s115 = sphi 0, %s117
    %s118 = sphi 0, %s115
    %s119 = sphi 0, %s118
    %s135 = sphi 0, %s119
    %s141 = sphi 0, %s143
    %s144 = sphi 0, %s141
    %s145 = sphi 0, %s144
    %s161 = sphi 0, %s145
  $region4: #{f1_metric.1} parent=0 // loop_header_branch
    %14 = sbr.rel (%p12) target = $region8
  $region5: #{f1_metric.1} parent=0 // loop_body
    %s16 = ssub.s32 %s11, 1
    %s17 = ssub.s32 %s11, 2
    %s24 = sadd.s32 1, %s19
    %p25 = scmp.ge.s32.totalorder %s24, 1
    %s26 = scalar_select %p25, 0, %s24
    %s27 = sadd.s32 1, %s18
    %s28 = scalar_select %p25, %s27, %s18
    %p29 = scmp.ge.s32.totalorder %s28, 2
    %s30 = scalar_select %p29, 0, %s28
    %s31 = ssub.s32 %s18, %s30
    %s32 = ssub.s32 %s19, %s26
    %s33 = sor.u32 %s31, %s32
    %p34 = scmp.eq.s32.totalorder %s33, 0
    %s36 = sadd.s32 %s35, 1
    %s37 = scalar_select %p34, %s35, %s36
    %p40 = pneg %p34
    %p41 = scmp.eq.s32.totalorder %s11, 1
    %p42 = por %p40, %p41
    %p43 = scmp.ne.s32.totalorder %s35, %s38
    %p44 = scmp.eq.s32.totalorder %s11, 0
    %p45 = por %p43, %p44
    %p46 = scmp.ne.s32.totalorder %s35, %s38
    %p47 = scmp.eq.s32.totalorder %s16, 1
    %p48 = por %p46, %p47
    %p49 = scmp.ne.s32.totalorder %s38, %s39
    %p50 = scmp.eq.s32.totalorder %s16, 0
    %p51 = por %p49, %p50
    %p52 = scmp.ne.s32.totalorder %s38, %s39
    %p53 = scmp.eq.s32.totalorder %s17, 1
    %p54 = por %p52, %p53
    %p56 = scmp.ne.s32.totalorder %s39, %s55
    %p57 = scmp.eq.s32.totalorder %s17, 0
    %p58 = por %p56, %p57
    %s59 = ssub.s32 %s18, %s30
    %s60 = ssub.s32 %s19, %s26
    %s61 = sor.u32 %s59, %s60
    %p62 = scmp.eq.s32.totalorder %s61, 0
    %s64 = sadd.s32 %s63, 1
    %s65 = scalar_select %p62, %s63, %s64
    %p68 = pneg %p62
    %p69 = scmp.eq.s32.totalorder %s11, 1
    %p70 = por %p68, %p69
    %p71 = scmp.ne.s32.totalorder %s63, %s66
    %p72 = scmp.eq.s32.totalorder %s11, 0
    %p73 = por %p71, %p72
    %p74 = scmp.ne.s32.totalorder %s63, %s66
    %p75 = scmp.eq.s32.totalorder %s16, 1
    %p76 = por %p74, %p75
    %p77 = scmp.ne.s32.totalorder %s66, %s67
    %p78 = scmp.eq.s32.totalorder %s16, 0
    %p79 = por %p77, %p78
    %p80 = scmp.ne.s32.totalorder %s66, %s67
    %p81 = scmp.eq.s32.totalorder %s17, 1
    %p82 = por %p80, %p81
    %p84 = scmp.ne.s32.totalorder %s67, %s83
    %p85 = scmp.eq.s32.totalorder %s17, 0
    %p86 = por %p84, %p85
    %s87 = ssub.s32 %s18, %s30
    %p88 = scmp.eq.s32.totalorder %s87, 0
    %s90 = sadd.s32 %s89, 1
    %s91 = scalar_select %p88, %s89, %s90
    %p94 = pneg %p88
    %p95 = scmp.eq.s32.totalorder %s11, 1
    %p96 = por %p94, %p95
    %p97 = scmp.ne.s32.totalorder %s89, %s92
    %p98 = scmp.eq.s32.totalorder %s11, 0
    %p99 = por %p97, %p98
    %p100 = scmp.ne.s32.totalorder %s89, %s92
    %p101 = scmp.eq.s32.totalorder %s16, 1
    %p102 = por %p100, %p101
    %p103 = scmp.ne.s32.totalorder %s92, %s93
    %p104 = scmp.eq.s32.totalorder %s16, 0
    %p105 = por %p103, %p104
    %p106 = scmp.ne.s32.totalorder %s92, %s93
    %p107 = scmp.eq.s32.totalorder %s17, 1
    %p108 = por %p106, %p107
    %p110 = scmp.ne.s32.totalorder %s93, %s109
    %p111 = scmp.eq.s32.totalorder %s17, 0
    %p112 = por %p110, %p111
    %s113 = ssub.s32 %s18, %s30
    %p114 = scmp.eq.s32.totalorder %s113, 0
    %s116 = sadd.s32 %s115, 1
    %s117 = scalar_select %p114, %s115, %s116
    %p120 = pneg %p114
    %p121 = scmp.eq.s32.totalorder %s11, 1
    %p122 = por %p120, %p121
    %p123 = scmp.ne.s32.totalorder %s115, %s118
    %p124 = scmp.eq.s32.totalorder %s11, 0
    %p125 = por %p123, %p124
    %p126 = scmp.ne.s32.totalorder %s115, %s118
    %p127 = scmp.eq.s32.totalorder %s16, 1
    %p128 = por %p126, %p127
    %p129 = scmp.ne.s32.totalorder %s118, %s119
    %p130 = scmp.eq.s32.totalorder %s16, 0
    %p131 = por %p129, %p130
    %p132 = scmp.ne.s32.totalorder %s118, %s119
    %p133 = scmp.eq.s32.totalorder %s17, 1
    %p134 = por %p132, %p133
    %p136 = scmp.ne.s32.totalorder %s119, %s135
    %p137 = scmp.eq.s32.totalorder %s17, 0
    %p138 = por %p136, %p137
    %s139 = ssub.s32 %s18, %s30
    %p140 = scmp.eq.s32.totalorder %s139, 0
    %s142 = sadd.s32 %s141, 1
    %s143 = scalar_select %p140, %s141, %s142
    %p146 = pneg %p140
    %p147 = scmp.eq.s32.totalorder %s11, 1
    %p148 = por %p146, %p147
    %p149 = scmp.ne.s32.totalorder %s141, %s144
    %p150 = scmp.eq.s32.totalorder %s11, 0
    %p151 = por %p149, %p150
    %p152 = scmp.ne.s32.totalorder %s141, %s144
    %p153 = scmp.eq.s32.totalorder %s16, 1
    %p154 = por %p152, %p153
    %p155 = scmp.ne.s32.totalorder %s144, %s145
    %p156 = scmp.eq.s32.totalorder %s16, 0
    %p157 = por %p155, %p156
    %p158 = scmp.ne.s32.totalorder %s144, %s145
    %p159 = scmp.eq.s32.totalorder %s17, 1
    %p160 = por %p158, %p159
    %p162 = scmp.ne.s32.totalorder %s145, %s161
    %p163 = scmp.eq.s32.totalorder %s17, 0
    %p164 = por %p162, %p163
    %p165 = scmp.le.s32.totalorder 1, %s11
    %p166 = scmp.lt.s32.totalorder %s11, 3
    %p167 = pnand %p165, %p166
    %p168 = pneg %p167
    // Predicated region
    $region9: #{f1_metric.1} parent=5 // pred_check
      _
    $region10: #{f1_metric.1} parent=5 // pred_check_branch
      %170 = sbr.rel (%p167) target = $region12
    $region11: #{f1_metric.1} parent=5 // pred_region
      %s171 = ssub.s32 %s11, 1
    $region12: #{f1_metric.1} parent=5 // pred_fallthru
      _
    %p172 = scmp.lt.s32.totalorder %s11, 2
    // Predicated region
    $region13: #{f1_metric.1} parent=5 // pred_check
      %p173 = pneg %p172
    $region14: #{f1_metric.1} parent=5 // pred_check_branch
      %175 = sbr.rel (%p173) target = $region16
    $region15: #{f1_metric.1} parent=5 // pred_region
      // Predicated region
      $region17: #{f1_metric.1} parent=15 // pred_check
        %p176 = pneg %p45
      $region18: #{f1_metric.1} parent=15 // pred_check_branch
        %178 = sbr.rel (%p176) target = $region20
      $region19: #{f1_metric.1} parent=15 // pred_region
        %p179 = scmp.lt.s32.totalorder %s18, 1
        %s180 = scalar_select %p179, %s18, 1
        %p181 = scmp.lt.s32.totalorder %s19, 0
        %s182 = scalar_select %p181, %s19, 0
        %s183 = sadd.s32 %s182, %s180
        %s184 = scalar_lea.vmem %s0, %s183
      $region20: #{f1_metric.1} parent=15 // pred_fallthru
        _
      // Predicated region
      $region21: #{f1_metric.1} parent=15 // pred_check
        %p185 = pneg %p73
      $region22: #{f1_metric.1} parent=15 // pred_check_branch
        %187 = sbr.rel (%p185) target = $region24
      $region23: #{f1_metric.1} parent=15 // pred_region
        %p188 = scmp.lt.s32.totalorder %s18, 1
        %s189 = scalar_select %p188, %s18, 1
        %p190 = scmp.lt.s32.totalorder %s19, 0
        %s191 = scalar_select %p190, %s19, 0
        %s192 = sadd.s32 %s191, %s189
        %s193 = scalar_lea.vmem %s1, %s192
      $region24: #{f1_metric.1} parent=15 // pred_fallthru
        _
    $region16: #{f1_metric.1} parent=5 // pred_fallthru
      _
    %p194 = scmp.le.s32.totalorder 1, %s11
    %p195 = scmp.lt.s32.totalorder %s11, 3
    %p196 = pnand %p194, %p195
    %p197 = pneg %p196
    // Predicated region
    $region25: #{f1_metric.1} parent=5 // pred_check
      _
    $region26: #{f1_metric.1} parent=5 // pred_check_branch
      %199 = sbr.rel (%p196) target = $region28
    $region27: #{f1_metric.1} parent=5 // pred_region
      %s200 = ssub.s32 %s11, 1
      %p201 = scmp.lt.s32.totalorder %s20, 1
      %s202 = scalar_select %p201, %s20, 1
      %p203 = scmp.lt.s32.totalorder %s21, 0
      %s204 = scalar_select %p203, %s21, 0
      %s205 = sadd.s32 %s204, %s202
      %s206 = scalar_lea.vmem %s0, %s205
      %p207 = pneg %p51
      %p208 = pneg %p48
      %p209 = scmp.lt.s32.totalorder %s20, 1
      %s210 = scalar_select %p209, %s20, 1
      %p211 = scmp.lt.s32.totalorder %s21, 0
      %s212 = scalar_select %p211, %s21, 0
      %s213 = sadd.s32 %s212, %s210
      %s214 = scalar_lea.vmem %s1, %s213
      %p215 = pneg %p79
      %p216 = pneg %p76
      %p217 = pneg %p105
      %p218 = pneg %p102
      %p219 = scmp.lt.s32.totalorder %s20, 1
      %s220 = scalar_select %p219, %s20, 1
      %s221 = scalar_lea.vmem %s2, %s220
      %p222 = pneg %p131
      %p223 = pneg %p128
      %p224 = scmp.lt.s32.totalorder %s20, 1
      %s225 = scalar_select %p224, %s20, 1
      %s226 = scalar_lea.vmem %s3, %s225
      %p227 = pneg %p157
      %p228 = pneg %p154
      %p229 = scmp.lt.s32.totalorder %s20, 1
      %s230 = scalar_select %p229, %s20, 1
      %s231 = scalar_lea.vmem %s4, %s230
      %p232 = scmp.lt.s32.totalorder %s20, 1
      %s233 = scalar_select %p232, %s20, 1
      %p234 = scmp.lt.s32.totalorder %s21, 0
      %s235 = scalar_select %p234, %s21, 0
      %s236 = sadd.s32 %s235, %s233
      %s237 = scalar_lea.vmem %s0, %s236
      %p238 = scmp.lt.s32.totalorder %s20, 1
      %s239 = scalar_select %p238, %s20, 1
      %p240 = scmp.lt.s32.totalorder %s21, 0
      %s241 = scalar_select %p240, %s21, 0
      %s242 = sadd.s32 %s241, %s239
      %s243 = scalar_lea.vmem %s1, %s242
      %p244 = scmp.lt.s32.totalorder %s20, 1
      %s245 = scalar_select %p244, %s20, 1
      %s246 = scalar_lea.vmem %s2, %s245
      %p247 = scmp.lt.s32.totalorder %s20, 1
      %s248 = scalar_select %p247, %s20, 1
      %s249 = scalar_lea.vmem %s3, %s248
      %p250 = scmp.lt.s32.totalorder %s20, 1
      %s251 = scalar_select %p250, %s20, 1
      %s252 = scalar_lea.vmem %s4, %s251
      %p253 = scmp.eq.s32.totalorder %s21, 0
      // Predicated region
      $region29: #{f1_metric.1} parent=27 // pred_check
        %p254 = pneg %p253
      $region30: #{f1_metric.1} parent=27 // pred_check_branch
        %256 = sbr.rel (%p254) target = $region32
      $region31: #{f1_metric.1} parent=27 // pred_region
        %257 = vst [vmem:[%s246] sm:$0x1] 0.0
        %258 = vst [vmem:[%s249] sm:$0x1] 0.0
        %259 = vst [vmem:[%s252] sm:$0x1] 0.0
      $region32: #{f1_metric.1} parent=27 // pred_fallthru
        _
      %v260 = vld [vmem:[%s237] sm:$0x1]
      %v261 = vld [vmem:[%s243] sm:$0x1]
      %v262 = vlaneseq
      %v263 = vand.u32 %v262, 127
      %vm264 = vcmp.lt.s32.totalorder %v263, 0
      %v265 = vsub.s32 0, %v263
      %v266 = vsel %vm264, %v265, %v263
      %v267 = vshrl.u32 %v266, 3
      %v268 = vand.u32 %v266, 7
      %v269 = vsub.s32 0, %v268
      %v270 = vsel %vm264, %v269, %v268
      %vm271 = vcmp.ne.s32.totalorder %v270, 0
      %vm272 = vcmp.lt.s32.totalorder %v270, 0
      %vm273 = vmand %vm272, %vm271
      %v274 = vadd.s32 %v270, 8
      %v275 = vsel %vm273, %v274, %v270
      %276 = vrot.lane.b32.xlu0 %v260, 127
      %v277 = vpop.permute.xlu0 %276
      %278 = vrot.lane.b32.xlu0 %v260, 1
      %v279 = vpop.permute.xlu0 %278
      %vm280 = vcmp.lt.s32.totalorder %v275, 7
      %vm281 = vcmp.ge.s32.totalorder %v275, 1
      %v282 = vsel %vm280, %v277, -inf
      %v283 = vsel %vm281, %v279, -inf
      %v284 = vmax.f32 %v282, %v283
      %v285 = vmax.f32 %v260, %v284
      %286 = vrot.lane.b32.xlu0 %v285, 126
      %v287 = vpop.permute.xlu0 %286
      %288 = vrot.lane.b32.xlu0 %v285, 2
      %v289 = vpop.permute.xlu0 %288
      %vm290 = vcmp.lt.s32.totalorder %v275, 6
      %vm291 = vcmp.ge.s32.totalorder %v275, 2
      %v292 = vsel %vm290, %v287, -inf
      %v293 = vsel %vm291, %v289, -inf
      %v294 = vmax.f32 %v292, %v293
      %v295 = vmax.f32 %v285, %v294
      %296 = vrot.lane.b32.xlu0 %v295, 124
      %v297 = vpop.permute.xlu0 %296
      %298 = vrot.lane.b32.xlu0 %v295, 4
      %v299 = vpop.permute.xlu0 %298
      %vm300 = vcmp.lt.s32.totalorder %v275, 4
      %vm301 = vcmp.ge.s32.totalorder %v275, 4
      %v302 = vsel %vm300, %v297, -inf
      %v303 = vsel %vm301, %v299, -inf
      %v304 = vmax.f32 %v302, %v303
      %v305 = vmax.f32 %v295, %v304
      %vm306 = vcmp.eq.f32.partialorder %v260, %v305
      %307 = vrot.lane.b32.xlu0 %v261, 127
      %v308 = vpop.permute.xlu0 %307
      %309 = vrot.lane.b32.xlu0 %v261, 1
      %v310 = vpop.permute.xlu0 %309
      %v311 = vsel %vm280, %v308, -inf
      %v312 = vsel %vm281, %v310, -inf
      %v313 = vmax.f32 %v311, %v312
      %v314 = vmax.f32 %v261, %v313
      %315 = vrot.lane.b32.xlu0 %v314, 126
      %v316 = vpop.permute.xlu0 %315
      %317 = vrot.lane.b32.xlu0 %v314, 2
      %v318 = vpop.permute.xlu0 %317
      %v319 = vsel %vm290, %v316, -inf
      %v320 = vsel %vm291, %v318, -inf
      %v321 = vmax.f32 %v319, %v320
      %v322 = vmax.f32 %v314, %v321
      %323 = vrot.lane.b32.xlu0 %v322, 124
      %v324 = vpop.permute.xlu0 %323
      %325 = vrot.lane.b32.xlu0 %v322, 4
      %v326 = vpop.permute.xlu0 %325
      %v327 = vsel %vm300, %v324, -inf
      %v328 = vsel %vm301, %v326, -inf
      %v329 = vmax.f32 %v327, %v328
      %v330 = vmax.f32 %v322, %v329
      %vm331 = vcmp.eq.f32.partialorder %v261, %v330
      %vm332 = vmand %vm306, %vm331
      %v333 = vld [vmem:[%s246] sm:$0x1]
      %v334 = vsel %vm332, 1, 0
      %v335 = vcvt.s32.f32 %v334
      %v336 = vadd.f32 %v335, 0.0
      %v337 = vadd.f32 %v333, %v336
      %338 = vst [vmem:[%s246] sm:$0x1] %v337
      %v339 = vld [vmem:[%s249] sm:$0x1]
      %v340 = vsel %vm306, 1, 0
      %v341 = vcvt.s32.f32 %v340
      %v342 = vadd.f32 %v341, 0.0
      %v343 = vadd.f32 %v339, %v342
      %344 = vst [vmem:[%s249] sm:$0x1] %v343
      %v345 = vld [vmem:[%s252] sm:$0x1]
      %v346 = vsel %vm331, 1, 0
      %v347 = vcvt.s32.f32 %v346
      %v348 = vadd.f32 %v347, 0.0
      %v349 = vadd.f32 %v345, %v348
      %350 = vst [vmem:[%s252] sm:$0x1] %v349
      %p351 = scmp.lt.s32.totalorder %s20, 1
      %s352 = scalar_select %p351, %s20, 1
      %s353 = scalar_lea.vmem %s2, %s352
      %p354 = scmp.lt.s32.totalorder %s20, 1
      %s355 = scalar_select %p354, %s20, 1
      %s356 = scalar_lea.vmem %s3, %s355
      %p357 = scmp.lt.s32.totalorder %s20, 1
      %s358 = scalar_select %p357, %s20, 1
      %s359 = scalar_lea.vmem %s4, %s358
      // Predicated region
      $region33: #{f1_metric.1} parent=27 // pred_check
        %p360 = pneg %p102
      $region34: #{f1_metric.1} parent=27 // pred_check_branch
        %362 = sbr.rel (%p360) target = $region36
      $region35: #{f1_metric.1} parent=27 // pred_region
        _
      $region36: #{f1_metric.1} parent=27 // pred_fallthru
        _
      // Predicated region
      $region37: #{f1_metric.1} parent=27 // pred_check
        %p363 = pneg %p128
      $region38: #{f1_metric.1} parent=27 // pred_check_branch
        %365 = sbr.rel (%p363) target = $region40
      $region39: #{f1_metric.1} parent=27 // pred_region
        _
      $region40: #{f1_metric.1} parent=27 // pred_fallthru
        _
      // Predicated region
      $region41: #{f1_metric.1} parent=27 // pred_check
        %p366 = pneg %p154
      $region42: #{f1_metric.1} parent=27 // pred_check_branch
        %368 = sbr.rel (%p366) target = $region44
      $region43: #{f1_metric.1} parent=27 // pred_region
        _
      $region44: #{f1_metric.1} parent=27 // pred_fallthru
        _
    $region28: #{f1_metric.1} parent=5 // pred_fallthru
      _
    %p369 = scmp.le.s32.totalorder 2, %s11
    // Predicated region
    $region45: #{f1_metric.1} parent=5 // pred_check
      %p370 = pneg %p369
    $region46: #{f1_metric.1} parent=5 // pred_check_branch
      %372 = sbr.rel (%p370) target = $region48
    $region47: #{f1_metric.1} parent=5 // pred_region
      %s373 = ssub.s32 %s11, 2
      // Predicated region
      $region49: #{f1_metric.1} parent=47 // pred_check
        %p374 = pneg %p108
      $region50: #{f1_metric.1} parent=47 // pred_check_branch
        %376 = sbr.rel (%p374) target = $region52
      $region51: #{f1_metric.1} parent=47 // pred_region
        %p377 = scmp.lt.s32.totalorder %s22, 1
        %s378 = scalar_select %p377, %s22, 1
        %s379 = scalar_lea.vmem %s2, %s378
      $region52: #{f1_metric.1} parent=47 // pred_fallthru
        _
      // Predicated region
      $region53: #{f1_metric.1} parent=47 // pred_check
        %p380 = pneg %p134
      $region54: #{f1_metric.1} parent=47 // pred_check_branch
        %382 = sbr.rel (%p380) target = $region56
      $region55: #{f1_metric.1} parent=47 // pred_region
        %p383 = scmp.lt.s32.totalorder %s22, 1
        %s384 = scalar_select %p383, %s22, 1
        %s385 = scalar_lea.vmem %s3, %s384
      $region56: #{f1_metric.1} parent=47 // pred_fallthru
        _
      // Predicated region
      $region57: #{f1_metric.1} parent=47 // pred_check
        %p386 = pneg %p160
      $region58: #{f1_metric.1} parent=47 // pred_check_branch
        %388 = sbr.rel (%p386) target = $region60
      $region59: #{f1_metric.1} parent=47 // pred_region
        %p389 = scmp.lt.s32.totalorder %s22, 1
        %s390 = scalar_select %p389, %s22, 1
        %s391 = scalar_lea.vmem %s4, %s390
      $region60: #{f1_metric.1} parent=47 // pred_fallthru
        _
    $region48: #{f1_metric.1} parent=5 // pred_fallthru
      _
  $region6: #{f1_metric.1} parent=0 // loop_footer
    %s15 = sadd.s32 1, %s11
  $region7: #{f1_metric.1} parent=0 // loop_footer_branch
    %10 = sbr.rel target = $region3
  $region8: #{f1_metric.1} parent=0 // loop_exit
    _

</llo_original>
